<compile_context>
chip_gen: v7x
topology: tpu7x:2x2x1
jax: 0.10.0
libtpu: 0.0.40
codegen_flags: <defaults>
</compile_context>

<pallas_src>
import math

import jax
import jax.numpy as jnp
from jax.experimental import pallas as pl
from jax.experimental.pallas import tpu as pltpu

# ~2 MiB (f32) per block; with double-buffered in+out plus in-kernel f32
# temporaries this stays well under the 32 MiB scoped VMEM limit below on
# v5e / v6e / v7x.
_MAX_BLOCK_ELEMS = 512 * 1024
_VMEM_LIMIT_BYTES = 32 * 1024 * 1024


def _round_up(a, b):
    return ((a + b - 1) // b) * b


def _softmax_lane_kernel(x_ref, o_ref):
    # (tm, D) tile; softmax along the lane (last) axis.
    x = x_ref[...].astype(jnp.float32)
    c = jnp.max(x, axis=-1, keepdims=True)
    e = jnp.exp(x - c)
    s = jnp.sum(e, axis=-1, keepdims=True)
    o_ref[...] = (e * pl.reciprocal(s, approx=False)).astype(o_ref.dtype)


def _softmax_sublane_kernel(x_ref, o_ref):
    # (tp, C, ts) tile; softmax along the sublane axis holding `dim` (axis=-2).
    x = x_ref[...].astype(jnp.float32)
    c = jnp.max(x, axis=-2, keepdims=True)
    e = jnp.exp(x - c)
    s = jnp.sum(e, axis=-2, keepdims=True)
    o_ref[...] = (e * pl.reciprocal(s, approx=False)).astype(o_ref.dtype)


def _softmax_last_dim(x2):
    """x2: (R, D), softmax over D (lanes)."""
    R, D = x2.shape
    # TODO(synk): tile D on an extra 'arbitrary' grid axis (online softmax with
    # m/l scratch) when a single (8, D) block no longer fits VMEM (vocab-sized D).
    if R <= 8:
        tm = R  # equals full row extent -> allowed block shape
    else:
        tm = max(8, (_MAX_BLOCK_ELEMS // max(D, 1)) // 8 * 8)
        tm = min(tm, _round_up(R, 8))
        if tm >= R and R >= 16:
            # keep >= 2 blocks so the parallel axis can shard across TensorCores
            tm = _round_up((R + 1) // 2, 8)
    grid = (pl.cdiv(R, tm),)
    return pl.pallas_call(
        _softmax_lane_kernel,
        out_shape=jax.ShapeDtypeStruct((R, D), x2.dtype),
        grid_spec=pltpu.PrefetchScalarGridSpec(
            num_scalar_prefetch=0,
            grid=grid,
            in_specs=[pl.BlockSpec((tm, D), lambda i: (i, 0))],
            out_specs=pl.BlockSpec((tm, D), lambda i: (i, 0)),
        ),
        compiler_params=pltpu.CompilerParams(
            dimension_semantics=("parallel",),
            vmem_limit_bytes=_VMEM_LIMIT_BYTES,
        ),
    )(x2)


def _softmax_middle_dim(x3):
    """x3: (P, C, S), softmax over C (sublanes); S stays lane-dense."""
    P, C, S = x3.shape
    # Lane tile over the suffix axis (multiple of 128, or the full extent).
    if S <= 128:
        ts = S
    else:
        ts = max(128, (_MAX_BLOCK_ELEMS // max(C, 1)) // 128 * 128)
        if ts >= S:
            ts = S
    # Prefix tile fills the remaining VMEM budget.
    per_p = max(C * ts, 1)
    tp = max(1, _MAX_BLOCK_ELEMS // per_p)
    tp = min(tp, P)
    # Keep >= 2 blocks when there is independent work (megacore on v7x).
    if tp >= P and pl.cdiv(S, ts) == 1 and P >= 2:
        tp = (P + 1) // 2
    grid = (pl.cdiv(P, tp), pl.cdiv(S, ts))
    return pl.pallas_call(
        _softmax_sublane_kernel,
        out_shape=jax.ShapeDtypeStruct((P, C, S), x3.dtype),
        grid_spec=pltpu.PrefetchScalarGridSpec(
            num_scalar_prefetch=0,
            grid=grid,
            in_specs=[pl.BlockSpec((tp, C, ts), lambda i, j: (i, 0, j))],
            out_specs=pl.BlockSpec((tp, C, ts), lambda i, j: (i, 0, j)),
        ),
        compiler_params=pltpu.CompilerParams(
            dimension_semantics=("parallel", "parallel"),
            vmem_limit_bytes=_VMEM_LIMIT_BYTES,
        ),
    )(x3)


def pallas_softmax(x, dim):
    """Numerically-stable softmax over `dim`; hot path in a Pallas TPU kernel."""
    ndim = x.ndim
    dim = dim % ndim
    shape = x.shape

    if dim == ndim - 1:
        # Reduce over the last axis: free reshape to (rows, D).
        D = shape[-1]
        R = int(math.prod(shape[:-1])) if ndim > 1 else 1
        out2 = _softmax_last_dim(x.reshape(R, D))
        return out2.reshape(shape)

    # Reduce over a middle/leading axis: free reshape to (prefix, C, suffix);
    # no transposed HBM copy is materialized.
    P = int(math.prod(shape[:dim])) if dim > 0 else 1
    C = shape[dim]
    S = int(math.prod(shape[dim + 1:]))
    out3 = _softmax_middle_dim(x.reshape(P, C, S))
    return out3.reshape(shape)


if __name__ == "__main__":
    key = jax.random.PRNGKey(0)
    # NCHW-style input, softmax over the channel axis (dim=1).
    x = jax.random.normal(key, (2, 4, 16, 16), dtype=jnp.float32)

    out = pallas_softmax(x, dim=1)
    jax.block_until_ready(out)
    ref = jax.nn.softmax(x, axis=1)
    assert out.shape == x.shape and out.dtype == x.dtype
    assert jnp.allclose(out, ref, atol=1e-5, rtol=1e-5)

    # Other reduction axes: last dim, a middle spatial dim, and the batch dim.
    out2 = pallas_softmax(x, dim=-1)
    jax.block_until_ready(out2)
    assert jnp.allclose(out2, jax.nn.softmax(x, axis=-1), atol=1e-5, rtol=1e-5)

    out3 = pallas_softmax(x, dim=2)
    jax.block_until_ready(out3)
    assert jnp.allclose(out3, jax.nn.softmax(x, axis=2), atol=1e-5, rtol=1e-5)

    out4 = pallas_softmax(x, dim=0)
    jax.block_until_ready(out4)
    assert jnp.allclose(out4, jax.nn.softmax(x, axis=0), atol=1e-5, rtol=1e-5)

    print("KERNEL_OK")
</pallas_src>

<mosaic_0001>
module attributes {stable_mosaic.version = 11 : i64} {
  func.func @_softmax_sublane_kernel(%arg0: i32, %arg1: i32, %arg2: memref<1x4x256xf32, #tpu.memory_space<vmem>>, %arg3: memref<1x4x256xf32, #tpu.memory_space<vmem>>) attributes {dimension_semantics = [#tpu.dimension_semantics<parallel>, #tpu.dimension_semantics<parallel>], iteration_bounds = array<i64: 2, 1>, scalar_prefetch = 0 : i64, scratch_operands = 0 : i64, tpu.core_type = #tpu.core_type<tc>, window_params = [{transform_indices = @transform_0, window_bounds = array<i64: 1, 4, 256>}, {transform_indices = @transform_1, window_bounds = array<i64: 1, 4, 256>}]} {
    %c0 = arith.constant 0 : index
    %c0_0 = arith.constant 0 : index
    %c0_1 = arith.constant 0 : index
    %0 = vector.load %arg2[%c0, %c0_0, %c0_1] : memref<1x4x256xf32, #tpu.memory_space<vmem>>, vector<1x4x256xf32>
    %cst = arith.constant dense<0xFF800000> : vector<1x256xf32>
    %1 = vector.multi_reduction <maximumf>, %0, %cst [1] : vector<1x4x256xf32> to vector<1x256xf32>
    %2 = vector.shape_cast %1 : vector<1x256xf32> to vector<1x1x256xf32>
    %3 = vector.broadcast %2 : vector<1x1x256xf32> to vector<1x4x256xf32>
    %4 = arith.subf %0, %3 : vector<1x4x256xf32>
    %5 = math.exp %4 : vector<1x4x256xf32>
    %cst_2 = arith.constant dense<0.000000e+00> : vector<1x256xf32>
    %6 = vector.multi_reduction <add>, %5, %cst_2 [1] : vector<1x4x256xf32> to vector<1x256xf32>
    %7 = vector.shape_cast %6 : vector<1x256xf32> to vector<1x1x256xf32>
    %8 = tpu.reciprocal %7 : vector<1x1x256xf32> -> vector<1x1x256xf32>
    %9 = vector.broadcast %8 : vector<1x1x256xf32> to vector<1x4x256xf32>
    %10 = arith.mulf %5, %9 : vector<1x4x256xf32>
    %c0_3 = arith.constant 0 : index
    %c0_4 = arith.constant 0 : index
    %c0_5 = arith.constant 0 : index
    %11 = vector.load %arg3[%c0_3, %c0_4, %c0_5] : memref<1x4x256xf32, #tpu.memory_space<vmem>>, vector<1x4x256xf32>
    tpu.vector_store %arg3[%c0_3, %c0_4, %c0_5], %10 {strides = array<i32>} : memref<1x4x256xf32, #tpu.memory_space<vmem>>, vector<1x4x256xf32>,
    return
  }
  func.func @transform_0(%arg0: i32, %arg1: i32) -> (i32, i32, i32) {
    %c0_i32 = arith.constant 0 : i32
    %c0_i32_0 = arith.constant 0 : i32
    return %arg0, %c0_i32, %arg1 : i32, i32, i32
  }
  func.func @transform_1(%arg0: i32, %arg1: i32) -> (i32, i32, i32) {
    %c0_i32 = arith.constant 0 : i32
    %c0_i32_0 = arith.constant 0 : i32
    return %arg0, %c0_i32, %arg1 : i32, i32, i32
  }
}

</mosaic_0001>

<llo_original>
// kernel: tpu_custom_call.1
$region0: #{tpu_custom_call.1}
  #allocation0 [shape = 'u32[]', space=smem, size = 0x4, offset = 0x4, fixed_abs, tag = 'smem constant byte address 0x4 - core index']
  #allocation1 [shape = 'u32[144,128]{1,0:T(1,128)}', space=vmem, size = 0x12000, scoped, tag = 'internal scratch']
  %s0 = inlined_call_operand.hbm [shape: f32[2,4,256], index: 0, kind: input, shape index: {}]
  %s1 = inlined_call_operand.hbm [shape: f32[2,4,256], index: 1, kind: output, shape index: {}]
  %s2 = sld [smem:[#allocation0]]
  $region41: #{tpu_custom_call.1} parent=0
    _
  %s4 = ssub.s32 1, %s2
  %s5 = scalar_select 0, %s4, %s2
  $region1: #{tpu_custom_call.1} parent=0
    #allocation2 [shape = 'u8[8192]{0}', space=vmem, size = 0x2000, scoped, tag = 'input window, operand 0']
    #allocation3 [shape = 's32[2]{0}', space=sflag, size = 0x8, scoped, tag = 'scoped memory for tpu_custom_call.1']
    #allocation4 [shape = 's32[2]{0}', space=sflag, size = 0x8, scoped, tag = 'scoped memory for tpu_custom_call.1']
    #allocation5 [shape = 'u8[8192]{0}', space=vmem, size = 0x2000, scoped, tag = 'output window, operand 0']
    %6 = vsyncpa [#allocation3], 0
    %s7 = scalar_lea.sflag [#allocation3], 1
    %8 = vsyncpa %s7, 0
    %9 = vsyncpa [#allocation4], 0
    %s10 = scalar_lea.sflag [#allocation4], 1
    %11 = vsyncpa %s10, 0
    loop: start=0, step=1, limit=4
    $region2: #{tpu_custom_call.1} parent=1 // loop_pre_header
      _
    $region3: #{tpu_custom_call.1} parent=1 // loop_header
      %s13 = sphi 0, %s17
      %p14 = scmp.ge.s32.totalorder %s13, 4
      %s20 = sphi 0, %s32
      %s21 = sphi 0, %s28
      %s22 = sphi 0, %s20
      %s23 = sphi 0, %s21
      %s24 = sphi 0, %s22
      %s25 = sphi 0, %s23
      %s37 = sphi 0, %s39
      %s40 = sphi 0, %s37
      %s41 = sphi 0, %s40
      %s57 = sphi 0, %s41
      %s65 = sphi 0, %s67
      %s68 = sphi 0, %s65
      %s69 = sphi 0, %s68
      %s85 = sphi 0, %s69
    $region4: #{tpu_custom_call.1} parent=1 // loop_header_branch
      %16 = sbr.rel (%p14) target = $region8
    $region5: #{tpu_custom_call.1} parent=1 // loop_body
      %s18 = ssub.s32 %s13, 1
      %s19 = ssub.s32 %s13, 2
      %s26 = sadd.s32 1, %s21
      %p27 = scmp.ge.s32.totalorder %s26, 1
      %s28 = scalar_select %p27, 0, %s26
      %s29 = sadd.s32 1, %s20
      %s30 = scalar_select %p27, %s29, %s20
      %p31 = scmp.ge.s32.totalorder %s30, 2
      %s32 = scalar_select %p31, 0, %s30
      %s33 = ssub.s32 %s20, %s32
      %s34 = ssub.s32 %s21, %s28
      %s35 = sor.u32 %s33, %s34
      %p36 = scmp.eq.s32.totalorder %s35, 0
      %s38 = sadd.s32 %s37, 1
      %s39 = scalar_select %p36, %s37, %s38
      %p42 = pneg %p36
      %p43 = scmp.eq.s32.totalorder %s13, 1
      %p44 = por %p42, %p43
      %p45 = scmp.ne.s32.totalorder %s37, %s40
      %p46 = scmp.eq.s32.totalorder %s13, 0
      %p47 = por %p45, %p46
      %p48 = scmp.ne.s32.totalorder %s37, %s40
      %p49 = scmp.eq.s32.totalorder %s18, 1
      %p50 = por %p48, %p49
      %p51 = scmp.ne.s32.totalorder %s40, %s41
      %p52 = scmp.eq.s32.totalorder %s18, 0
      %p53 = por %p51, %p52
      %p54 = scmp.ne.s32.totalorder %s40, %s41
      %p55 = scmp.eq.s32.totalorder %s19, 1
      %p56 = por %p54, %p55
      %p58 = scmp.ne.s32.totalorder %s41, %s57
      %p59 = scmp.eq.s32.totalorder %s19, 0
      %p60 = por %p58, %p59
      %s61 = ssub.s32 %s20, %s32
      %s62 = ssub.s32 %s21, %s28
      %s63 = sor.u32 %s61, %s62
      %p64 = scmp.eq.s32.totalorder %s63, 0
      %s66 = sadd.s32 %s65, 1
      %s67 = scalar_select %p64, %s65, %s66
      %p70 = pneg %p64
      %p71 = scmp.eq.s32.totalorder %s13, 1
      %p72 = por %p70, %p71
      %p73 = scmp.ne.s32.totalorder %s65, %s68
      %p74 = scmp.eq.s32.totalorder %s13, 0
      %p75 = por %p73, %p74
      %p76 = scmp.ne.s32.totalorder %s65, %s68
      %p77 = scmp.eq.s32.totalorder %s18, 1
      %p78 = por %p76, %p77
      %p79 = scmp.ne.s32.totalorder %s68, %s69
      %p80 = scmp.eq.s32.totalorder %s18, 0
      %p81 = por %p79, %p80
      %p82 = scmp.ne.s32.totalorder %s68, %s69
      %p83 = scmp.eq.s32.totalorder %s19, 1
      %p84 = por %p82, %p83
      %p86 = scmp.ne.s32.totalorder %s69, %s85
      %p87 = scmp.eq.s32.totalorder %s19, 0
      %p88 = por %p86, %p87
      %p89 = scmp.le.s32.totalorder 1, %s13
      %p90 = scmp.lt.s32.totalorder %s13, 3
      %p91 = pnand %p89, %p90
      %p92 = pneg %p91
      // Predicated region
      $region9: #{tpu_custom_call.1} parent=5 // pred_check
        _
      $region10: #{tpu_custom_call.1} parent=5 // pred_check_branch
        %94 = sbr.rel (%p91) target = $region12
      $region11: #{tpu_custom_call.1} parent=5 // pred_region
        %s95 = ssub.s32 %s13, 1
      $region12: #{tpu_custom_call.1} parent=5 // pred_fallthru
        _
      %p96 = scmp.lt.s32.totalorder %s13, 2
      // Predicated region
      $region13: #{tpu_custom_call.1} parent=5 // pred_check
        %p97 = pneg %p96
      $region14: #{tpu_custom_call.1} parent=5 // pred_check_branch
        %99 = sbr.rel (%p97) target = $region16
      $region15: #{tpu_custom_call.1} parent=5 // pred_region
        // Predicated region
        $region17: #{tpu_custom_call.1} parent=15 // pred_check
          %p100 = pneg %p47
        $region18: #{tpu_custom_call.1} parent=15 // pred_check_branch
          %102 = sbr.rel (%p100) target = $region20
        $region19: #{tpu_custom_call.1} parent=15 // pred_region
          %s103 = sand.u32 %s37, 1
          %s104 = scalar_lea.sflag [#allocation3], %s103
          %s105 = sand.u32 %s37, 1
          %s106 = smul.addr %s105, 8
          %s107 = scalar_lea.vmem [#allocation2], %s106
          %s108 = smul.u32 2, %s21
          %s110 = ssub.s32 128, 128
          %111 = vsyncadd %s104, %s110
          %s112 = smul.addr %s20, 2
          %s113 = sadd.s32 %s108, %s112
          %s114 = smul.addr %s113, 64
          %s115 = scalar_lea.hbm %s0, %s114
          %s117 = sshll.u32 %s107, 4
          %s118 = int_to_ptr.vmem [resolvable:$true] %s117
          %120 = dma.hbm_to_vmem [thread:$0]  %s115, 128, %s118, %s104
        $region20: #{tpu_custom_call.1} parent=15 // pred_fallthru
          _
      $region16: #{tpu_custom_call.1} parent=5 // pred_fallthru
        _
      %p121 = scmp.le.s32.totalorder 1, %s13
      %p122 = scmp.lt.s32.totalorder %s13, 3
      %p123 = pnand %p121, %p122
      %p124 = pneg %p123
      // Predicated region
      $region21: #{tpu_custom_call.1} parent=5 // pred_check
        _
      $region22: #{tpu_custom_call.1} parent=5 // pred_check_branch
        %126 = sbr.rel (%p123) target = $region24
      $region23: #{tpu_custom_call.1} parent=5 // pred_region
        %s127 = ssub.s32 %s13, 1
        %s128 = sand.u32 %s40, 1
        %s129 = scalar_lea.sflag [#allocation3], %s128
        %s130 = sand.u32 %s40, 1
        %s131 = smul.addr %s130, 8
        %s132 = scalar_lea.vmem [#allocation2], %s131
        // Predicated region
        $region25: #{tpu_custom_call.1} parent=23 // pred_check
          %p133 = pneg %p53
        $region26: #{tpu_custom_call.1} parent=23 // pred_check_branch
          %135 = sbr.rel (%p133) target = $region28
        $region27: #{tpu_custom_call.1} parent=23 // pred_region
          %136 = dma.done %s129, 128
        $region28: #{tpu_custom_call.1} parent=23 // pred_fallthru
          _
        %s137 = sand.u32 %s40, 1
        %s138 = scalar_lea.sflag [#allocation3], %s137
        %s139 = sand.u32 %s40, 1
        %s140 = smul.addr %s139, 8
        %s141 = scalar_lea.vmem [#allocation2], %s140
        %p142 = pneg %p53
        %p143 = pneg %p50
        %p144 = pneg %p81
        %p145 = pneg %p78
        %s146 = sand.u32 %s68, 1
        %s147 = scalar_lea.sflag [#allocation4], %s146
        %s148 = sand.u32 %s68, 1
        %s149 = smul.addr %s148, 8
        %s150 = scalar_lea.vmem [#allocation5], %s149
        %s151 = smul.u32 2, %s23
        %s152 = smul.u32 2, %s23
        %v153 = vld [vmem:[%s132] sm:$0xff]
        %v155 = vcombine.high %v153, %v153
        %vm157 = vcmask 1043456
        %v158 = vsel %vm157, %v153, -inf
        %v159 = vrot.slane %v158, 4
        %v160 = vmax.f32 %v158, %v159
        %v161 = vrot.slane %v160, 2
        %v162 = vmax.f32 %v160, %v161
        %v163 = vrot.slane %v162, 1
        %v164 = vmax.f32 %v162, %v163
        %v165 = vsel %vm157, %v155, -inf
        %v166 = vrot.slane %v165, 4
        %v167 = vmax.f32 %v165, %v166
        %v168 = vrot.slane %v167, 2
        %v169 = vmax.f32 %v167, %v168
        %v170 = vrot.slane %v169, 1
        %v171 = vmax.f32 %v169, %v170
        %v174 = vcombine.low %v164, %v171
        %v176 = vsub.f32 %v153, %v174
        %v177 = vmul.f32 %v176, 1.442695
        %v178 = vpow.pop %v177
        %v180 = vcombine.high %v178, %v178
        %v182 = vsel %vm157, %v178, 0.0
        %v183 = vrot.slane %v182, 4
        %v184 = vadd.f32 %v182, %v183
        %v185 = vrot.slane %v184, 2
        %v186 = vadd.f32 %v184, %v185
        %v187 = vrot.slane %v186, 1
        %v188 = vadd.f32 %v186, %v187
        %v189 = vsel %vm157, %v180, 0.0
        %v190 = vrot.slane %v189, 4
        %v191 = vadd.f32 %v189, %v190
        %v192 = vrot.slane %v191, 2
        %v193 = vadd.f32 %v191, %v192
        %v194 = vrot.slane %v193, 1
        %v195 = vadd.f32 %v193, %v194
        %v196 = vrcp.pop %v188
        %v197 = vrcp.pop %v195
        %v200 = vcombine.low %v196, %v197
        %v202 = vmul.f32 %v178, %v200
        %203 = vst [vmem:[%s150] sm:$0xff] %v202
        %s204 = sand.u32 %s68, 1
        %s205 = scalar_lea.sflag [#allocation4], %s204
        %s206 = sand.u32 %s68, 1
        %s207 = smul.addr %s206, 8
        %s208 = scalar_lea.vmem [#allocation5], %s207
        // Predicated region
        $region29: #{tpu_custom_call.1} parent=23 // pred_check
          %p209 = pneg %p78
        $region30: #{tpu_custom_call.1} parent=23 // pred_check_branch
          %211 = sbr.rel (%p209) target = $region32
        $region31: #{tpu_custom_call.1} parent=23 // pred_region
          %s212 = smul.u32 2, %s23
          %s214 = ssub.s32 128, 128
          %215 = vsyncadd %s205, %s214
          %s216 = smul.addr %s22, 2
          %s217 = sadd.s32 %s212, %s216
          %s218 = smul.addr %s217, 64
          %s219 = scalar_lea.hbm %s1, %s218
          %s221 = sshll.u32 %s208, 4
          %s222 = int_to_ptr.vmem [resolvable:$true] %s221
          %224 = dma.vmem_to_hbm [thread:$0]  %s222, 128, %s219, %s205
        $region32: #{tpu_custom_call.1} parent=23 // pred_fallthru
          _
      $region24: #{tpu_custom_call.1} parent=5 // pred_fallthru
        _
      %p225 = scmp.le.s32.totalorder 2, %s13
      // Predicated region
      $region33: #{tpu_custom_call.1} parent=5 // pred_check
        %p226 = pneg %p225
      $region34: #{tpu_custom_call.1} parent=5 // pred_check_branch
        %228 = sbr.rel (%p226) target = $region36
      $region35: #{tpu_custom_call.1} parent=5 // pred_region
        %s229 = ssub.s32 %s13, 2
        // Predicated region
        $region37: #{tpu_custom_call.1} parent=35 // pred_check
          %p230 = pneg %p84
        $region38: #{tpu_custom_call.1} parent=35 // pred_check_branch
          %232 = sbr.rel (%p230) target = $region40
        $region39: #{tpu_custom_call.1} parent=35 // pred_region
          %s233 = sand.u32 %s69, 1
          %s234 = scalar_lea.sflag [#allocation4], %s233
          %s235 = sand.u32 %s69, 1
          %s236 = smul.addr %s235, 8
          %s237 = scalar_lea.vmem [#allocation5], %s236
          %238 = dma.done %s234, 128
        $region40: #{tpu_custom_call.1} parent=35 // pred_fallthru
          _
      $region36: #{tpu_custom_call.1} parent=5 // pred_fallthru
        _
    $region6: #{tpu_custom_call.1} parent=1 // loop_footer
      %s17 = sadd.s32 1, %s13
    $region7: #{tpu_custom_call.1} parent=1 // loop_footer_branch
      %12 = sbr.rel target = $region3
    $region8: #{tpu_custom_call.1} parent=1 // loop_exit
      _
    %239 = vsyncpa [#allocation3], 1
    %s240 = scalar_lea.sflag [#allocation3], 1
    %241 = vsyncpa %s240, 1
    %242 = vsyncpa [#allocation4], 1
    %s243 = scalar_lea.sflag [#allocation4], 1
    %244 = vsyncpa %s243, 1

</llo_original>
